<compile_context>
chip_gen: v7x
topology: tpu7x:2x2x1
jax: 0.10.0
libtpu: 0.0.40
codegen_flags: <defaults>
</compile_context>

<pallas_src>
import math

import jax
import jax.numpy as jnp
from jax.experimental import pallas as pl
from jax.experimental.pallas import tpu as pltpu

_EPS = 1e-12
_LANE_CANDIDATES = (1024, 512, 256, 128)
_BLOCK_BYTE_BUDGET = 4 << 20          # ~4 MiB per input stream per block


# ------------------------------ tiling plans ---------------------------------


def _plan_flat(total):
    """Lane-dense (lanes, rows, padded) view of `total` elements (no padding when
    a 128-multiple lane count divides `total` exactly)."""
    fallback = None
    for lanes in _LANE_CANDIDATES:
        if total % lanes:
            continue
        rows = total // lanes
        if rows >= 8 and rows % 8 == 0:
            return lanes, rows, False
        fallback = (lanes, rows, False)   # smallest divisible lanes -> most rows
    if fallback is not None:
        return fallback
    # TODO(synk): element counts not divisible by 128 pay one zero-pad pass.
    lanes = 128
    rows = -(-total // lanes)
    return lanes, rows, True


def _tile_rows(rows, lanes, elem_bytes, budget=_BLOCK_BYTE_BUDGET):
    """Budget-sized row tile (multiple of 8); no rows % tr divisibility required."""
    if rows * lanes * elem_bytes <= budget:
        return rows
    tr = (budget // (lanes * elem_bytes)) // 8 * 8
    return max(8, min(tr, rows))


def _lane_view(x, lead, rows, lanes):
    """Reshape x to lead + (rows, lanes), zero-padding the flattened tail only when
    the lane plan does not divide exactly."""
    lead = tuple(lead)
    per = x.size // max(1, math.prod(lead))
    x2 = x.reshape(lead + (per,))
    need = rows * lanes
    if need != per:
        x2 = jnp.pad(x2, [(0, 0)] * len(lead) + [(0, need - per)])
    return x2.reshape(lead + (rows, lanes))


def _vmem_limit(itemsizes, tr, lanes, scratch_bytes=0):
    """streams * 2 buffers * block + scratch + slack, floored at 32 MiB."""
    block = tr * lanes
    need = sum(2 * block * b for b in itemsizes) + scratch_bytes + (2 << 20)
    return int(max(need, 32 << 20))


# -------------------------------- kernels -------------------------------------


def _abs_diff_kernel(p_ref, t_ref, o_ref):
    o_ref[...] = jnp.abs(p_ref[...] - t_ref[...]).astype(o_ref.dtype)


def _abs_diff_w_kernel(p_ref, t_ref, w_ref, o_ref):
    o_ref[...] = (jnp.abs(p_ref[...] - t_ref[...]) * w_ref[...]).astype(o_ref.dtype)


def _make_reduce_kernel(*, weighted, both, red_axes, tr, lanes, acc_rows,
                        rows_valid, needs_mask, block_row_index):
    """Build sum(|d|) / sum(w*|d|) / (sum(w*|d|), sum(w)) kernels.

    Accumulates into (acc_rows, lanes) f32 VMEM scratch with a per-step sublane
    group-sum (pure VPU); does the cross-lane reduce + SMEM scalar write once per
    output block (last step along `red_axes`). `block_row_index()` gives the global
    row-tile index used to mask a partial last tile."""

    def first_last():
        is_first = pl.program_id(red_axes[0]) == 0
        is_last = pl.program_id(red_axes[0]) == pl.num_programs(red_axes[0]) - 1
        for a in red_axes[1:]:
            is_first = jnp.logical_and(is_first, pl.program_id(a) == 0)
            is_last = jnp.logical_and(is_last,
                                      pl.program_id(a) == pl.num_programs(a) - 1)
        return is_first, is_last

    def fold(v):
        if acc_rows == tr:
            return v
        return v.reshape(tr // acc_rows, acc_rows, lanes).sum(axis=0)

    def body(p_ref, t_ref, w_ref, out_refs, acc_refs):
        is_first, is_last = first_last()

        @pl.when(is_first)
        def _():
            for a in acc_refs:
                a[...] = jnp.zeros_like(a)

        d = jnp.abs(p_ref[...] - t_ref[...]).astype(jnp.float32)
        if weighted:
            w = w_ref[...].astype(jnp.float32)
            vals = [d * w] + ([w] if both else [])
        else:
            vals = [d]
        if needs_mask:
            row = jax.lax.broadcasted_iota(jnp.int32, (tr, lanes), 0)
            valid = (block_row_index() * tr + row) < rows_valid
            vals = [jnp.where(valid, v, 0.0) for v in vals]
        for acc, v in zip(acc_refs, vals):
            acc[...] += fold(v)

        @pl.when(is_last)
        def _():
            for o, acc in zip(out_refs, acc_refs):
                o[0, 0] = jnp.sum(acc[...])

    if not weighted:
        def kernel(p_ref, t_ref, s_ref, acc_ref):
            body(p_ref, t_ref, None, (s_ref,), (acc_ref,))
    elif not both:
        def kernel(p_ref, t_ref, w_ref, s_ref, acc_ref):
            body(p_ref, t_ref, w_ref, (s_ref,), (acc_ref,))
    else:
        def kernel(p_ref, t_ref, w_ref, ls_ref, ws_ref, lacc_ref, wacc_ref):
            body(p_ref, t_ref, w_ref, (ls_ref, ws_ref), (lacc_ref, wacc_ref))
    return kernel


# ------------------------------ pallas wrappers --------------------------------


def _reduce_flat(pred, target, weight, both):
    """Global sums over the flattened tensors (weight None or full-shape)."""
    total = pred.size
    eb = pred.dtype.itemsize
    lanes, rows, _ = _plan_flat(total)
    tr = _tile_rows(rows, lanes, eb)
    tiles = pl.cdiv(rows, tr)
    # Megacore split: two full-sized groups only when no overhang work is created.
    if tiles >= 2 and tiles % 2 == 0:
        groups, tpg = 2, tiles // 2
    else:
        groups, tpg = 1, tiles
    weighted = weight is not None
    n_out = 2 if (weighted and both) else 1
    acc_rows = 8 if tr % 8 == 0 else tr
    needs_mask = (rows % tr) != 0

    arrays = [pred, target] + ([weight] if weighted else [])
    views = [_lane_view(a, (), rows, lanes) for a in arrays]

    kernel = _make_reduce_kernel(
        weighted=weighted, both=both, red_axes=(1,), tr=tr, lanes=lanes,
        acc_rows=acc_rows, rows_valid=rows, needs_mask=needs_mask,
        block_row_index=lambda: pl.program_id(0) * tpg + pl.program_id(1))

    in_spec = pl.BlockSpec((tr, lanes), lambda g, t: (g * tpg + t, 0))
    out_spec = pl.BlockSpec((1, 1), lambda g, t: (g, 0), memory_space=pltpu.SMEM)
    out_sds = jax.ShapeDtypeStruct((groups, 1), jnp.float32)
    scratch = [pltpu.VMEM((acc_rows, lanes), jnp.float32) for _ in range(n_out)]

    res = pl.pallas_call(
        kernel,
        out_shape=out_sds if n_out == 1 else (out_sds,) * n_out,
        grid=(groups, tpg),
        in_specs=[in_spec] * len(views),
        out_specs=out_spec if n_out == 1 else (out_spec,) * n_out,
        scratch_shapes=scratch,
        compiler_params=pltpu.CompilerParams(
            dimension_semantics=("parallel", "arbitrary"),
            vmem_limit_bytes=_vmem_limit([v.dtype.itemsize for v in views], tr,
                                         lanes, n_out * acc_rows * lanes * 4)),
        cost_estimate=pl.CostEstimate(
            flops=(2 + len(views)) * total, transcendentals=0,
            bytes_accessed=sum(v.size * v.dtype.itemsize for v in views)),
    )(*views)

    if n_out == 1:
        return jnp.sum(res)
    return tuple(jnp.sum(o) for o in res)


def _reduce_per_sample(pred, target, weight, both):
    """Per-sample sum(w*|d|) (and sum(w)); weight has pred's full shape."""
    n = pred.shape[0]
    per = pred.size // n
    eb = pred.dtype.itemsize
    lanes, rows, _ = _plan_flat(per)
    tr = _tile_rows(rows, lanes, eb)
    tiles = pl.cdiv(rows, tr)
    n_out = 2 if both else 1
    acc_rows = 8 if tr % 8 == 0 else tr
    needs_mask = (rows % tr) != 0

    views = [_lane_view(a, (n,), rows, lanes) for a in (pred, target, weight)]

    kernel = _make_reduce_kernel(
        weighted=True, both=both, red_axes=(1,), tr=tr, lanes=lanes,
        acc_rows=acc_rows, rows_valid=rows, needs_mask=needs_mask,
        block_row_index=lambda: pl.program_id(1))

    in_spec = pl.BlockSpec((None, tr, lanes), lambda b, t: (b, t, 0))
    out_spec = pl.BlockSpec((1, 1), lambda b, t: (b, 0), memory_space=pltpu.SMEM)
    out_sds = jax.ShapeDtypeStruct((n, 1), jnp.float32)
    scratch = [pltpu.VMEM((acc_rows, lanes), jnp.float32) for _ in range(n_out)]

    res = pl.pallas_call(
        kernel,
        out_shape=out_sds if n_out == 1 else (out_sds,) * n_out,
        grid=(n, tiles),
        in_specs=[in_spec] * 3,
        out_specs=out_spec if n_out == 1 else (out_spec,) * n_out,
        scratch_shapes=scratch,
        compiler_params=pltpu.CompilerParams(
            dimension_semantics=("parallel", "arbitrary"),
            vmem_limit_bytes=_vmem_limit([v.dtype.itemsize for v in views], tr,
                                         lanes, n_out * acc_rows * lanes * 4)),
        cost_estimate=pl.CostEstimate(
            flops=5 * pred.size, transcendentals=0,
            bytes_accessed=sum(v.size * v.dtype.itemsize for v in views)),
    )(*views)
    if n_out == 1:
        return res[:, 0]
    return res[0][:, 0], res[1][:, 0]


def _reduce_per_sample_bcast(pred, target, weight, both):
    """Per-sample sums when weight is (N, 1, H, W): the same weight tile is re-read
    across the C grid axis via its index_map -- no broadcast materialization."""
    n, c = pred.shape[0], pred.shape[1]
    hw = pred.size // (n * c)
    eb = pred.dtype.itemsize
    lanes, rows, _ = _plan_flat(hw)
    tr = _tile_rows(rows, lanes, eb)
    tiles = pl.cdiv(rows, tr)
    n_out = 2 if both else 1
    acc_rows = 8 if tr % 8 == 0 else tr
    needs_mask = (rows % tr) != 0

    p4 = _lane_view(pred, (n, c), rows, lanes)
    t4 = _lane_view(target, (n, c), rows, lanes)
    w3 = _lane_view(weight, (n,), rows, lanes)

    kernel = _make_reduce_kernel(
        weighted=True, both=both, red_axes=(1, 2), tr=tr, lanes=lanes,
        acc_rows=acc_rows, rows_valid=rows, needs_mask=needs_mask,
        block_row_index=lambda: pl.program_id(2))

    pt_spec = pl.BlockSpec((None, None, tr, lanes), lambda b, ci, t: (b, ci, t, 0))
    w_spec = pl.BlockSpec((None, tr, lanes), lambda b, ci, t: (b, t, 0))
    out_spec = pl.BlockSpec((1, 1), lambda b, ci, t: (b, 0), memory_space=pltpu.SMEM)
    out_sds = jax.ShapeDtypeStruct((n, 1), jnp.float32)
    scratch = [pltpu.VMEM((acc_rows, lanes), jnp.float32) for _ in range(n_out)]

    res = pl.pallas_call(
        kernel,
        out_shape=out_sds if n_out == 1 else (out_sds,) * n_out,
        grid=(n, c, tiles),
        in_specs=[pt_spec, pt_spec, w_spec],
        out_specs=out_spec if n_out == 1 else (out_spec,) * n_out,
        scratch_shapes=scratch,
        compiler_params=pltpu.CompilerParams(
            dimension_semantics=("parallel", "arbitrary", "arbitrary"),
            vmem_limit_bytes=_vmem_limit(
                [p4.dtype.itemsize, t4.dtype.itemsize, w3.dtype.itemsize], tr,
                lanes, n_out * acc_rows * lanes * 4)),
        cost_estimate=pl.CostEstimate(
            flops=5 * pred.size, transcendentals=0,
            bytes_accessed=(p4.size * p4.dtype.itemsize
                            + t4.size * t4.dtype.itemsize
                            + c * w3.size * w3.dtype.itemsize)),
    )(p4, t4, w3)
    if n_out == 1:
        return res[:, 0]
    return res[0][:, 0], res[1][:, 0]


def _l1_none(pred, target, weight):
    """Elementwise |pred - target| (* weight); weight None or full-shape."""
    total = pred.size
    eb = pred.dtype.itemsize
    lanes, rows, padded = _plan_flat(total)
    tr = _tile_rows(rows, lanes, eb)
    tiles = pl.cdiv(rows, tr)

    arrays = [pred, target] + ([weight] if weight is not None else [])
    views = [_lane_view(a, (), rows, lanes) for a in arrays]
    kernel = _abs_diff_w_kernel if weight is not None else _abs_diff_kernel

    spec = pl.BlockSpec((tr, lanes), lambda i: (i, 0))
    out = pl.pallas_call(
        kernel,
        out_shape=jax.ShapeDtypeStruct((rows, lanes), pred.dtype),
        grid=(tiles,),
        in_specs=[spec] * len(views),
        out_specs=spec,
        compiler_params=pltpu.CompilerParams(
            dimension_semantics=("parallel",),
            vmem_limit_bytes=_vmem_limit(
                [v.dtype.itemsize for v in views] + [eb], tr, lanes)),
        cost_estimate=pl.CostEstimate(
            flops=3 * total, transcendentals=0,
            bytes_accessed=(len(views) + 1) * total * eb),
    )(*views)

    flat = out.reshape(-1)
    if padded:
        # TODO(synk): odd element counts pay one slice pass here.
        flat = flat[:total]
    return flat.reshape(pred.shape)


def _l1_none_bcast(pred, target, weight):
    """Elementwise |pred - target| * weight with weight of shape (N, 1, H, W)."""
    n, c = pred.shape[0], pred.shape[1]
    hw = pred.size // (n * c)
    eb = pred.dtype.itemsize
    lanes, rows, padded = _plan_flat(hw)
    tr = _tile_rows(rows, lanes, eb)
    tiles = pl.cdiv(rows, tr)

    p4 = _lane_view(pred, (n, c), rows, lanes)
    t4 = _lane_view(target, (n, c), rows, lanes)
    w3 = _lane_view(weight, (n,), rows, lanes)

    pt_spec = pl.BlockSpec((None, None, tr, lanes), lambda b, ci, t: (b, ci, t, 0))
    w_spec = pl.BlockSpec((None, tr, lanes), lambda b, ci, t: (b, t, 0))

    out = pl.pallas_call(
        _abs_diff_w_kernel,
        out_shape=jax.ShapeDtypeStruct((n, c, rows, lanes), pred.dtype),
        grid=(n, c, tiles),
        in_specs=[pt_spec, pt_spec, w_spec],
        out_specs=pt_spec,
        compiler_params=pltpu.CompilerParams(
            dimension_semantics=("parallel", "parallel", "parallel"),
            vmem_limit_bytes=_vmem_limit(
                [p4.dtype.itemsize, t4.dtype.itemsize, w3.dtype.itemsize, eb],
                tr, lanes)),
        cost_estimate=pl.CostEstimate(
            flops=3 * pred.size, transcendentals=0,
            bytes_accessed=3 * pred.size * eb),
    )(p4, t4, w3)

    flat = out.reshape(n, c, rows * lanes)
    if padded:
        flat = flat[..., :hw]
    return flat.reshape(pred.shape)


# ---------------------------------- module -------------------------------------


class L1Loss:
    """JAX/Pallas port of mmediting-style L1Loss (mean absolute error)."""

    def __init__(self, loss_weight=1.0, reduction='mean', sample_wise=False):
        if reduction not in ('none', 'mean', 'sum'):
            raise ValueError(f'Unsupported reduction mode: {reduction}. '
                             f"Supported ones are: ['none', 'mean', 'sum']")
        self.loss_weight = loss_weight
        self.reduction = reduction
        self.sample_wise = sample_wise

    def __call__(self, pred, target, weight=None, **kwargs):
        n = pred.shape[0]
        total = pred.size

        bcast_w = False
        if weight is not None and weight.shape != pred.shape:
            if pred.ndim >= 2 and weight.size * pred.shape[1] == pred.size:
                bcast_w = True           # (N,1,H,W) mask -> handled in-kernel
            else:
                # TODO(synk): unusual weight shapes fall back to an XLA broadcast.
                weight = jnp.broadcast_to(weight, pred.shape)

        if self.reduction == 'none':
            if weight is None:
                out = _l1_none(pred, target, None)
            elif bcast_w:
                out = _l1_none_bcast(pred, target, weight)
            else:
                out = _l1_none(pred, target, weight)
            return self.loss_weight * out

        if weight is None:
            lsum = _reduce_flat(pred, target, None, both=False)
            loss = lsum if self.reduction == 'sum' else lsum / total
            return self.loss_weight * loss.astype(pred.dtype)

        if self.reduction == 'sum':
            if bcast_w:
                lsum = jnp.sum(_reduce_per_sample_bcast(pred, target, weight,
                                                        both=False))
            else:
                lsum = _reduce_flat(pred, target, weight, both=False)
            return self.loss_weight * lsum.astype(pred.dtype)

        # reduction == 'mean' with weight
        if self.sample_wise:
            if bcast_w:
                ls, ws = _reduce_per_sample_bcast(pred, target, weight, both=True)
            else:
                ls, ws = _reduce_per_sample(pred, target, weight, both=True)
            loss = jnp.sum(ls / (ws + _EPS)) / n
        else:
            if bcast_w:
                ls, ws = _reduce_per_sample_bcast(pred, target, weight, both=True)
                loss = jnp.sum(ls) / (jnp.sum(ws) + _EPS)
            else:
                ls, ws = _reduce_flat(pred, target, weight, both=True)
                loss = ls / (ws + _EPS)
        return self.loss_weight * loss.astype(pred.dtype)


# ----------------------------------- main ---------------------------------------


if __name__ == "__main__":
    key = jax.random.PRNGKey(0)
    k1, k2, k3, k4 = jax.random.split(key, 4)
    shape = (2, 4, 16, 16)  # (N, C, H, W)
    pred = jax.random.normal(k1, shape, dtype=jnp.float32)
    target = jax.random.normal(k2, shape, dtype=jnp.float32)
    weight = (jax.random.uniform(k3, shape) > 0.5).astype(jnp.float32)
    weight_c1 = (jax.random.uniform(k4, (shape[0], 1) + shape[2:]) > 0.5
                 ).astype(jnp.float32)

    # mean, no weight
    out = jax.block_until_ready(L1Loss(loss_weight=1.0, reduction='mean')(pred, target))
    ref = jnp.mean(jnp.abs(pred - target))
    assert jnp.allclose(out, ref, rtol=1e-5, atol=1e-6), (out, ref)

    # weighted mean, sample_wise=True
    out2 = jax.block_until_ready(
        L1Loss(loss_weight=0.5, reduction='mean', sample_wise=True)(pred, target, weight))
    l_el = jnp.abs(pred - target) * weight
    ws = weight.sum(axis=(1, 2, 3))
    ref2 = 0.5 * jnp.sum(l_el.sum(axis=(1, 2, 3)) / (ws + _EPS)) / shape[0]
    assert jnp.allclose(out2, ref2, rtol=1e-5, atol=1e-6), (out2, ref2)

    # weighted mean, sample_wise=False
    out3 = jax.block_until_ready(
        L1Loss(reduction='mean', sample_wise=False)(pred, target, weight))
    ref3 = l_el.sum() / (weight.sum() + _EPS)
    assert jnp.allclose(out3, ref3, rtol=1e-5, atol=1e-6), (out3, ref3)

    # weighted sum
    out4 = jax.block_until_ready(L1Loss(reduction='sum')(pred, target, weight))
    assert jnp.allclose(out4, l_el.sum(), rtol=1e-5, atol=1e-4), (out4, l_el.sum())

    # reduction='none' (with and without weight)
    out5 = jax.block_until_ready(L1Loss(reduction='none')(pred, target))
    assert out5.shape == shape
    assert jnp.allclose(out5, jnp.abs(pred - target), rtol=1e-6, atol=1e-7)
    out5w = jax.block_until_ready(L1Loss(reduction='none')(pred, target, weight))
    assert jnp.allclose(out5w, l_el, rtol=1e-6, atol=1e-7)

    # reduction='sum', no weight
    out6 = jax.block_until_ready(L1Loss(reduction='sum')(pred, target))
    assert jnp.allclose(out6, jnp.sum(jnp.abs(pred - target)), rtol=1e-5, atol=1e-4)

    # ---- broadcastable (N, 1, H, W) weight: no materialized expand ----
    w_exp = jnp.broadcast_to(weight_c1, shape)
    l_el_b = jnp.abs(pred - target) * w_exp

    out7 = jax.block_until_ready(
        L1Loss(reduction='mean', sample_wise=True)(pred, target, weight_c1))
    ws_b = w_exp.sum(axis=(1, 2, 3))
    ref7 = jnp.sum(l_el_b.sum(axis=(1, 2, 3)) / (ws_b + _EPS)) / shape[0]
    assert jnp.allclose(out7, ref7, rtol=1e-5, atol=1e-6), (out7, ref7)

    out8 = jax.block_until_ready(
        L1Loss(reduction='mean', sample_wise=False)(pred, target, weight_c1))
    ref8 = l_el_b.sum() / (w_exp.sum() + _EPS)
    assert jnp.allclose(out8, ref8, rtol=1e-5, atol=1e-6), (out8, ref8)

    out9 = jax.block_until_ready(L1Loss(reduction='sum')(pred, target, weight_c1))
    assert jnp.allclose(out9, l_el_b.sum(), rtol=1e-5, atol=1e-4), (out9, l_el_b.sum())

    out10 = jax.block_until_ready(L1Loss(reduction='none')(pred, target, weight_c1))
    assert jnp.allclose(out10, l_el_b, rtol=1e-6, atol=1e-7)

    print("KERNEL_OK")
</pallas_src>

<mosaic_0001>
module attributes {stable_mosaic.version = 11 : i64} {
  func.func @kernel(%arg0: i32, %arg1: i32, %arg2: memref<8x256xf32, #tpu.memory_space<vmem>>, %arg3: memref<8x256xf32, #tpu.memory_space<vmem>>, %arg4: memref<1x1xf32, #tpu.memory_space<smem>>, %arg5: memref<8x256xf32, #tpu.memory_space<vmem>>) attributes {dimension_semantics = [#tpu.dimension_semantics<parallel>, #tpu.dimension_semantics<arbitrary>], iteration_bounds = array<i64: 1, 1>, scalar_prefetch = 0 : i64, scratch_operands = 1 : i64, tpu.core_type = #tpu.core_type<tc>, window_params = [{transform_indices = @transform_0, window_bounds = array<i64: 8, 256>}, {transform_indices = @transform_1, window_bounds = array<i64: 8, 256>}, {transform_indices = @transform_2, window_bounds = array<i64: 1, 1>}]} {
    %c0_i32 = arith.constant 0 : i32
    %0 = arith.cmpi eq, %arg1, %c0_i32 : i32
    %c0_i32_0 = arith.constant 0 : i32
    %1 = arith.cmpi eq, %arg1, %c0_i32_0 : i32
    %2 = arith.extui %0 : i1 to i32
    %c0_i32_1 = arith.constant 0 : i32
    %3 = arith.cmpi ne, %2, %c0_i32_1 : i32
    scf.if %3 {
      %cst = arith.constant 0.000000e+00 : f32
      %13 = vector.broadcast %cst : f32 to vector<8x256xf32>
      %c0_10 = arith.constant 0 : index
      %c0_11 = arith.constant 0 : index
      %14 = vector.load %arg5[%c0_10, %c0_11] : memref<8x256xf32, #tpu.memory_space<vmem>>, vector<8x256xf32>
      tpu.vector_store %arg5[%c0_10, %c0_11], %13 {strides = array<i32>} : memref<8x256xf32, #tpu.memory_space<vmem>>, vector<8x256xf32>,
    } else {
    }
    %c0 = arith.constant 0 : index
    %c0_2 = arith.constant 0 : index
    %4 = vector.load %arg2[%c0, %c0_2] : memref<8x256xf32, #tpu.memory_space<vmem>>, vector<8x256xf32>
    %c0_3 = arith.constant 0 : index
    %c0_4 = arith.constant 0 : index
    %5 = vector.load %arg3[%c0_3, %c0_4] : memref<8x256xf32, #tpu.memory_space<vmem>>, vector<8x256xf32>
    %6 = arith.subf %4, %5 : vector<8x256xf32>
    %7 = math.absf %6 : vector<8x256xf32>
    %c0_5 = arith.constant 0 : index
    %c0_6 = arith.constant 0 : index
    %8 = vector.load %arg5[%c0_5, %c0_6] : memref<8x256xf32, #tpu.memory_space<vmem>>, vector<8x256xf32>
    %9 = arith.addf %8, %7 : vector<8x256xf32>
    %c0_7 = arith.constant 0 : index
    %c0_8 = arith.constant 0 : index
    %10 = vector.load %arg5[%c0_7, %c0_8] : memref<8x256xf32, #tpu.memory_space<vmem>>, vector<8x256xf32>
    tpu.vector_store %arg5[%c0_7, %c0_8], %9 {strides = array<i32>} : memref<8x256xf32, #tpu.memory_space<vmem>>, vector<8x256xf32>,
    %11 = arith.extui %1 : i1 to i32
    %c0_i32_9 = arith.constant 0 : i32
    %12 = arith.cmpi ne, %11, %c0_i32_9 : i32
    scf.if %12 {
      %c0_10 = arith.constant 0 : index
      %c0_11 = arith.constant 0 : index
      %13 = vector.load %arg5[%c0_10, %c0_11] : memref<8x256xf32, #tpu.memory_space<vmem>>, vector<8x256xf32>
      %14 = vector.shape_cast %13 : vector<8x256xf32> to vector<1x8x256xf32>
      %cst = arith.constant dense<0.000000e+00> : vector<1xf32>
      %15 = vector.multi_reduction <add>, %14, %cst [1, 2] : vector<1x8x256xf32> to vector<1xf32>
      %16 = vector.shape_cast %15 : vector<1xf32> to vector<1x1x1xf32>
      %17 = vector.extract %16[0, 0, 0] : f32 from vector<1x1x1xf32>
      %c0_12 = arith.constant 0 : index
      %c0_13 = arith.constant 0 : index
      %18 = memref.load %arg4[%c0_12, %c0_13] : memref<1x1xf32, #tpu.memory_space<smem>>
      memref.store %17, %arg4[%c0_12, %c0_13] : memref<1x1xf32, #tpu.memory_space<smem>>
    } else {
    }
    return
  }
  func.func @transform_0(%arg0: i32, %arg1: i32) -> (i32, i32) {
    %c1_i32 = arith.constant 1 : i32
    %0 = arith.muli %arg0, %c1_i32 : i32
    %1 = arith.addi %0, %arg1 : i32
    %c0_i32 = arith.constant 0 : i32
    %c0_i32_0 = arith.constant 0 : i32
    return %1, %c0_i32 : i32, i32
  }
  func.func @transform_1(%arg0: i32, %arg1: i32) -> (i32, i32) {
    %c1_i32 = arith.constant 1 : i32
    %0 = arith.muli %arg0, %c1_i32 : i32
    %1 = arith.addi %0, %arg1 : i32
    %c0_i32 = arith.constant 0 : i32
    %c0_i32_0 = arith.constant 0 : i32
    return %1, %c0_i32 : i32, i32
  }
  func.func @transform_2(%arg0: i32, %arg1: i32) -> (i32, i32) {
    %c0_i32 = arith.constant 0 : i32
    %c0_i32_0 = arith.constant 0 : i32
    return %arg0, %c0_i32 : i32, i32
  }
}

</mosaic_0001>

<llo_original>
// kernel: tpu_custom_call.1
$region0: #{tpu_custom_call.1}
  #allocation0 [shape = 'u32[]', space=smem, size = 0x4, offset = 0x4, fixed_abs, tag = 'smem constant byte address 0x4 - core index']
  #allocation1 [shape = 'u32[144,128]{1,0:T(1,128)}', space=vmem, size = 0x12000, scoped, tag = 'internal scratch']
  #allocation2 [shape = 'f32[8,256]{1,0:T(8,128)}', space=vmem, size = 0x2000, scoped, tag = 'scratch operand']
  %s0 = inlined_call_operand.hbm [shape: f32[8,256], index: 0, kind: input, shape index: {}]
  %s1 = inlined_call_operand.hbm [shape: f32[8,256], index: 1, kind: input, shape index: {}]
  %s2 = inlined_call_operand.hbm [shape: f32[1,1], index: 2, kind: output, shape index: {}]
  %s3 = sld [smem:[#allocation0]]
  $region34: #{tpu_custom_call.1} parent=0
    _
  %s5 = ssub.s32 1, %s3
  %s6 = scalar_select 0, %s5, %s3
  $region1: #{tpu_custom_call.1} parent=0
    #allocation3 [shape = 'u8[8192]{0}', space=vmem, size = 0x2000, scoped, tag = 'input window, operand 0, single buffered']
    #allocation4 [shape = 's32[1]{0}', space=sflag, size = 0x4, scoped, tag = 'scoped memory for tpu_custom_call.1']
    #allocation5 [shape = 's32[1]{0}', space=sflag, size = 0x4, scoped, tag = 'scoped memory for tpu_custom_call.1']
    #allocation6 [shape = 'u8[8192]{0}', space=vmem, size = 0x2000, scoped, tag = 'input window, operand 1, single buffered']
    #allocation7 [shape = 's32[1]{0}', space=sflag, size = 0x4, scoped, tag = 'scoped memory for tpu_custom_call.1']
    #allocation8 [shape = 'u8[512]{0}', space=smem, size = 0x200, scoped, tag = 'output window, operand 0, single buffered']
    %7 = vsyncpa [#allocation4], 0
    %8 = vsyncpa [#allocation7], 0
    %9 = vsyncpa [#allocation5], 0
    // Predicated region
    $region2: #{tpu_custom_call.1} parent=1 // pred_check
      _
    $region3: #{tpu_custom_call.1} parent=1 // pred_check_branch
      %11 = sbr.rel (0) target = $region5
    $region4: #{tpu_custom_call.1} parent=1 // pred_region
      %s12 = sadd.s32 0, 0
      %s14 = ssub.s32 256, 256
      %15 = vsyncadd [#allocation4], %s14
      %s16 = smul.addr %s12, 2
      %s17 = smul.addr %s16, 128
      %s18 = scalar_lea.hbm %s0, %s17
      %s20 = sshll.u32 [#allocation3], 4
      %s21 = int_to_ptr.vmem [resolvable:$true] %s20
      %23 = dma.hbm_to_vmem [thread:$0]  %s18, 256, %s21, [#allocation4]
    $region5: #{tpu_custom_call.1} parent=1 // pred_fallthru
      _
    // Predicated region
    $region6: #{tpu_custom_call.1} parent=1 // pred_check
      _
    $region7: #{tpu_custom_call.1} parent=1 // pred_check_branch
      %25 = sbr.rel (0) target = $region9
    $region8: #{tpu_custom_call.1} parent=1 // pred_region
      %s26 = sadd.s32 0, 0
      %s28 = ssub.s32 256, 256
      %29 = vsyncadd [#allocation7], %s28
      %s30 = smul.addr %s26, 2
      %s31 = smul.addr %s30, 128
      %s32 = scalar_lea.hbm %s1, %s31
      %s34 = sshll.u32 [#allocation6], 4
      %s35 = int_to_ptr.vmem [resolvable:$true] %s34
      %37 = dma.hbm_to_vmem [thread:$0]  %s32, 256, %s35, [#allocation7]
    $region9: #{tpu_custom_call.1} parent=1 // pred_fallthru
      _
    // Predicated region
    $region10: #{tpu_custom_call.1} parent=1 // pred_check
      _
    $region11: #{tpu_custom_call.1} parent=1 // pred_check_branch
      %39 = sbr.rel (0) target = $region13
    $region12: #{tpu_custom_call.1} parent=1 // pred_region
      %40 = dma.done [#allocation4], 256
    $region13: #{tpu_custom_call.1} parent=1 // pred_fallthru
      _
    // Predicated region
    $region14: #{tpu_custom_call.1} parent=1 // pred_check
      _
    $region15: #{tpu_custom_call.1} parent=1 // pred_check_branch
      %42 = sbr.rel (0) target = $region17
    $region16: #{tpu_custom_call.1} parent=1 // pred_region
      %43 = dma.done [#allocation7], 256
    $region17: #{tpu_custom_call.1} parent=1 // pred_fallthru
      _
    %s44 = sadd.s32 0, 0
    %s45 = sadd.s32 0, 0
    %p46 = scmp.eq.s32.totalorder 0, 0
    // Predicated region
    $region18: #{tpu_custom_call.1} parent=1 // pred_check
      %p47 = pneg %p46
    $region19: #{tpu_custom_call.1} parent=1 // pred_check_branch
      %49 = sbr.rel (%p47) target = $region21
    $region20: #{tpu_custom_call.1} parent=1 // pred_region
      %50 = vst [vmem:[#allocation2] sm:$0xff] 0.0
      %51 = vst [vmem:[#allocation2 + $0x8] sm:$0xff] 0.0
    $region21: #{tpu_custom_call.1} parent=1 // pred_fallthru
      _
    %v52 = vld [vmem:[#allocation3] sm:$0xff]
    %v53 = vld [vmem:[#allocation3 + $0x8] sm:$0xff]
    %v54 = vld [vmem:[#allocation6] sm:$0xff]
    %v55 = vld [vmem:[#allocation6 + $0x8] sm:$0xff]
    %v56 = vsub.f32 %v52, %v54
    %v57 = vsub.f32 %v53, %v55
    %v58 = vand.u32 2147483647, %v56
    %v59 = vand.u32 2147483647, %v57
    %v60 = vld [vmem:[#allocation2] sm:$0xff]
    %v61 = vld [vmem:[#allocation2 + $0x8] sm:$0xff]
    %v62 = vadd.f32 %v60, %v58
    %v63 = vadd.f32 %v61, %v59
    %64 = vst [vmem:[#allocation2] sm:$0xff] %v62
    %65 = vst [vmem:[#allocation2 + $0x8] sm:$0xff] %v63
    // Predicated region
    $region22: #{tpu_custom_call.1} parent=1 // pred_check
      %p66 = pneg %p46
    $region23: #{tpu_custom_call.1} parent=1 // pred_check_branch
      %68 = sbr.rel (%p66) target = $region25
    $region24: #{tpu_custom_call.1} parent=1 // pred_region
      %v69 = vld [vmem:[#allocation2] sm:$0xff]
      %v70 = vld [vmem:[#allocation2 + $0x8] sm:$0xff]
      %v71 = vadd.f32 %v69, %v70
      %72 = vadd.xlane.f32.xlu0 %v71
      %v73 = vpop.xlane.xlu0 %72
      %v74 = vrot.slane %v73, 4
      %v75 = vadd.f32 %v73, %v74
      %v76 = vrot.slane %v75, 2
      %v77 = vadd.f32 %v75, %v76
      %v78 = vrot.slane %v77, 1
      %v79 = vadd.f32 %v77, %v78
      %s80 = vtos %v79
      %s81 = scalar_lea.smem [#allocation8], 0
      %82 = sst [smem:[%s81]] %s80
    $region25: #{tpu_custom_call.1} parent=1 // pred_fallthru
      _
    // Predicated region
    $region26: #{tpu_custom_call.1} parent=1 // pred_check
      _
    $region27: #{tpu_custom_call.1} parent=1 // pred_check_branch
      %84 = sbr.rel (0) target = $region29
    $region28: #{tpu_custom_call.1} parent=1 // pred_region
      %s86 = ssub.s32 16, 16
      %87 = vsyncadd [#allocation5], %s86
      %90 = dma.smem_to_hbm [#allocation8], 16, %s2, [#allocation5]
    $region29: #{tpu_custom_call.1} parent=1 // pred_fallthru
      _
    // Predicated region
    $region30: #{tpu_custom_call.1} parent=1 // pred_check
      _
    $region31: #{tpu_custom_call.1} parent=1 // pred_check_branch
      %92 = sbr.rel (0) target = $region33
    $region32: #{tpu_custom_call.1} parent=1 // pred_region
      %93 = dma.done [#allocation5], 16
    $region33: #{tpu_custom_call.1} parent=1 // pred_fallthru
      _
    %94 = sfence
    %95 = vsyncpa [#allocation4], 1
    %96 = vsyncpa [#allocation7], 1
    %97 = vsyncpa [#allocation5], 1

</llo_original>
